<compile_context>
chip_gen: v7x
topology: tpu7x:2x2x1
jax: 0.10.0
libtpu: 0.0.40
codegen_flags: <defaults>
</compile_context>

<pallas_src>
import functools
import math

import jax
import jax.numpy as jnp
from jax.experimental import pallas as pl
from jax.experimental.pallas import tpu as pltpu


# --------------------------------------------------------------------- tiling
def _pick_divisor_tile(dim, candidates):
    """Largest candidate that exactly divides `dim`, else the full dim."""
    for t in candidates:
        if t <= dim and dim % t == 0:
            return t
    return dim


def _pick_block(dim, candidates):
    """Largest candidate <= dim (partial blocks are fine for elementwise), else full dim."""
    for t in candidates:
        if t <= dim:
            return t
    return dim


def _lane_fold(n, c, max_lanes=2048):
    """Largest r dividing n with (r*c) % 128 == 0 and r*c <= max_lanes (lane-dense fold)."""
    base = 128 // math.gcd(c, 128)
    if n % base != 0 or base * c > max_lanes:
        return 1
    r = base
    while n % (2 * r) == 0 and 2 * r * c <= max_lanes:
        r *= 2
    return r


# -------------------------------------------------------------------- kernels
def _factor_kernel(q_ref, w_ref, b_ref, mask_ref, f_ref, acc_ref, *, inv_n):
    """Grid = (batch tiles, token tiles[reduction]).

    factor = 1 + sigmoid(mean_N(q) @ W + b) * drop_mask     (f32, shape (TB, C))
    """
    k = pl.program_id(1)

    @pl.when(k == 0)
    def _():
        acc_ref[...] = jnp.zeros_like(acc_ref)

    # partial token-sum in f32 (pooling / matmul / sigmoid stay f32 for any input dtype)
    acc_ref[...] += jnp.sum(q_ref[...].astype(jnp.float32), axis=1)

    @pl.when(k == pl.num_programs(1) - 1)
    def _():
        pooled = acc_ref[...] * inv_n                                     # (TB, C)
        logits = jnp.dot(pooled, w_ref[...],
                         preferred_element_type=jnp.float32) + b_ref[...]
        gate = jax.nn.sigmoid(logits)                                     # (TB, C)
        f_ref[...] = (1.0 + gate * mask_ref[...]).astype(f_ref.dtype)     # (TB, C)


def _scale_kernel(x_ref, f_ref, o_ref):
    """out = x * factor : single full-tile multiply in the input dtype."""
    f = f_ref[...].astype(x_ref.dtype)                                    # (TB, L)
    o_ref[...] = (x_ref[...] * f[:, None, :]).astype(o_ref.dtype)


# -------------------------------------------------------------------- wrapper
@functools.partial(jax.jit, static_argnames=("training", "drop"))
def channel_via_residual(x, last_q, w, b, rng_key, *, training=False, drop=0.0):
    B, N, C = x.shape
    itemsize = x.dtype.itemsize

    # drop-path keep mask: matches torch.rand(B,1,1).ge_(drop).div(1-drop)
    if training and drop > 0.0:
        keep = (jax.random.uniform(rng_key, (B,)) >= drop).astype(jnp.float32)
        mask = (keep / (1.0 - drop)).reshape(B, 1)
    else:
        mask = jnp.ones((B, 1), jnp.float32)

    TB = B if B <= 8 else 8

    # ---------------- stage 1: per-(batch, channel) residual factor ----------------
    tn_cap = max(8, (4 * 1024 * 1024) // max(1, TB * C * itemsize))
    TN = _pick_divisor_tile(
        N, tuple(t for t in (1024, 512, 256, 128, 64, 32, 16, 8) if t <= tn_cap))

    factor = pl.pallas_call(
        functools.partial(_factor_kernel, inv_n=1.0 / N),
        out_shape=jax.ShapeDtypeStruct((B, C), jnp.float32),
        grid_spec=pltpu.PrefetchScalarGridSpec(
            num_scalar_prefetch=0,
            grid=(pl.cdiv(B, TB), N // TN),
            in_specs=[
                pl.BlockSpec((TB, TN, C), lambda i, k: (i, k, 0)),   # last_q
                pl.BlockSpec((C, C), lambda i, k: (0, 0)),           # W
                pl.BlockSpec((1, C), lambda i, k: (0, 0)),           # bias
                pl.BlockSpec((TB, 1), lambda i, k: (i, 0)),          # drop-path mask
            ],
            out_specs=pl.BlockSpec((TB, C), lambda i, k: (i, 0)),
            scratch_shapes=[pltpu.VMEM((TB, C), jnp.float32)],
        ),
        compiler_params=pltpu.CompilerParams(
            dimension_semantics=("parallel", "arbitrary"),
            vmem_limit_bytes=64 * 1024 * 1024),
        cost_estimate=pl.CostEstimate(
            flops=int(2 * B * C * C + B * N * C),
            transcendentals=int(B * C),
            bytes_accessed=int(B * N * C * last_q.dtype.itemsize
                               + C * C * w.dtype.itemsize + B * C * 4)),
    )(last_q, w, b, mask)

    # ---------------- stage 2: out = x * factor  (lane-dense elementwise stream) ---
    r = _lane_fold(N, C)            # fold r token rows into the lane dim
    MP = N // r
    L = r * C                       # last block dim (multiple of 128 when possible)
    x2 = x.reshape(B, MP, L)
    f2 = jnp.tile(factor, (1, r))   # (B, L) — negligible size

    # cap one x/out block at ~4 MiB: 2x in + 2x out double-buffered < v7x 64 MiB VMEM
    tm_cap = max(8, (4 * 1024 * 1024) // max(1, TB * L * itemsize))
    TM = _pick_block(MP, tuple(t for t in (256, 128, 64, 32, 16, 8) if t <= tm_cap))

    out2 = pl.pallas_call(
        _scale_kernel,
        out_shape=jax.ShapeDtypeStruct((B, MP, L), x.dtype),
        grid_spec=pltpu.PrefetchScalarGridSpec(
            num_scalar_prefetch=0,
            grid=(pl.cdiv(B, TB), pl.cdiv(MP, TM)),
            in_specs=[
                pl.BlockSpec((TB, TM, L), lambda i, j: (i, j, 0)),   # x
                pl.BlockSpec((TB, L), lambda i, j: (i, 0)),          # factor rows
            ],
            out_specs=pl.BlockSpec((TB, TM, L), lambda i, j: (i, j, 0)),
        ),
        compiler_params=pltpu.CompilerParams(
            dimension_semantics=("parallel", "parallel"),
            vmem_limit_bytes=64 * 1024 * 1024),
        cost_estimate=pl.CostEstimate(
            flops=int(B * N * C),
            transcendentals=0,
            bytes_accessed=int(2 * B * N * C * itemsize + B * L * 4)),
        # TODO(synk): add input_output_aliases={0: 0} when callers can donate x.
    )(x2, f2)

    return out2.reshape(B, N, C)


# ------------------------------------------------------------------ reference
def _reference_eval(x, last_q, w, b):
    pooled = jnp.mean(last_q, axis=1)                     # (B, C)
    gate = jax.nn.sigmoid(pooled @ w + b)                 # (B, C)
    return x + x * gate[:, None, :]


def _reference_train(x, last_q, w, b, rng_key, drop):
    pooled = jnp.mean(last_q, axis=1)
    gate = jax.nn.sigmoid(pooled @ w + b)
    keep = (jax.random.uniform(rng_key, (x.shape[0],)) >= drop).astype(jnp.float32)
    m = keep / (1.0 - drop)
    return x + (x * gate[:, None, :]) * m[:, None, None]


if __name__ == "__main__":
    key = jax.random.PRNGKey(0)
    k_x, k_q, k_w, k_b, k_drop = jax.random.split(key, 5)

    B, N, C = 2, 16, 32
    x = jax.random.normal(k_x, (B, N, C), jnp.float32)
    last_q = jax.random.normal(k_q, (B, N, C), jnp.float32)
    w = jax.random.normal(k_w, (C, C), jnp.float32) * 0.05
    b = jax.random.normal(k_b, (1, C), jnp.float32) * 0.01

    # eval-mode forward: out = x + m(x, last_q)
    out = channel_via_residual(x, last_q, w, b, k_drop, training=False, drop=0.1)
    out = jax.block_until_ready(out)
    assert out.shape == (B, N, C)
    ref = _reference_eval(x, last_q, w, b)
    assert jnp.allclose(out, ref, atol=1e-5, rtol=1e-5), float(jnp.max(jnp.abs(out - ref)))

    # train-mode forward: out = x + m(x, last_q) * keep/(1-drop)   (same RNG key)
    out_tr = channel_via_residual(x, last_q, w, b, k_drop, training=True, drop=0.1)
    out_tr = jax.block_until_ready(out_tr)
    ref_tr = _reference_train(x, last_q, w, b, k_drop, 0.1)
    assert out_tr.shape == (B, N, C)
    assert jnp.allclose(out_tr, ref_tr, atol=1e-5, rtol=1e-5), \
        float(jnp.max(jnp.abs(out_tr - ref_tr)))

    print("KERNEL_OK")
</pallas_src>

<mosaic_0001>
module attributes {stable_mosaic.version = 11 : i64} {
  func.func @_factor_kernel(%arg0: i32, %arg1: i32, %arg2: memref<2x16x32xf32, #tpu.memory_space<vmem>>, %arg3: memref<32x32xf32, #tpu.memory_space<vmem>>, %arg4: memref<1x32xf32, #tpu.memory_space<vmem>>, %arg5: memref<2x1xf32, #tpu.memory_space<vmem>>, %arg6: memref<2x32xf32, #tpu.memory_space<vmem>>, %arg7: memref<2x32xf32, #tpu.memory_space<vmem>>) attributes {dimension_semantics = [#tpu.dimension_semantics<parallel>, #tpu.dimension_semantics<arbitrary>], iteration_bounds = array<i64: 1, 1>, scalar_prefetch = 0 : i64, scratch_operands = 1 : i64, tpu.core_type = #tpu.core_type<tc>, window_params = [{transform_indices = @transform_0, window_bounds = array<i64: 2, 16, 32>}, {pipeline_mode = #tpu.pipeline_mode<synchronous>, transform_indices = @transform_1, window_bounds = array<i64: 32, 32>}, {pipeline_mode = #tpu.pipeline_mode<synchronous>, transform_indices = @transform_2, window_bounds = array<i64: 1, 32>}, {transform_indices = @transform_3, window_bounds = array<i64: 2, 1>}, {transform_indices = @transform_4, window_bounds = array<i64: 2, 32>}]} {
    %c0_i32 = arith.constant 0 : i32
    %0 = arith.cmpi eq, %arg1, %c0_i32 : i32
    %1 = arith.extui %0 : i1 to i32
    %c0_i32_0 = arith.constant 0 : i32
    %2 = arith.cmpi ne, %1, %c0_i32_0 : i32
    scf.if %2 {
      %cst_9 = arith.constant 0.000000e+00 : f32
      %11 = vector.broadcast %cst_9 : f32 to vector<2x32xf32>
      %c0_10 = arith.constant 0 : index
      %c0_11 = arith.constant 0 : index
      %12 = vector.load %arg7[%c0_10, %c0_11] : memref<2x32xf32, #tpu.memory_space<vmem>>, vector<2x32xf32>
      tpu.vector_store %arg7[%c0_10, %c0_11], %11 {strides = array<i32>} : memref<2x32xf32, #tpu.memory_space<vmem>>, vector<2x32xf32>,
    } else {
    }
    %c0 = arith.constant 0 : index
    %c0_1 = arith.constant 0 : index
    %3 = vector.load %arg7[%c0, %c0_1] : memref<2x32xf32, #tpu.memory_space<vmem>>, vector<2x32xf32>
    %c0_2 = arith.constant 0 : index
    %c0_3 = arith.constant 0 : index
    %c0_4 = arith.constant 0 : index
    %4 = vector.load %arg2[%c0_2, %c0_3, %c0_4] : memref<2x16x32xf32, #tpu.memory_space<vmem>>, vector<2x16x32xf32>
    %cst = arith.constant dense<0.000000e+00> : vector<2x32xf32>
    %5 = vector.multi_reduction <add>, %4, %cst [1] : vector<2x16x32xf32> to vector<2x32xf32>
    %6 = arith.addf %3, %5 : vector<2x32xf32>
    %c0_5 = arith.constant 0 : index
    %c0_6 = arith.constant 0 : index
    %7 = vector.load %arg7[%c0_5, %c0_6] : memref<2x32xf32, #tpu.memory_space<vmem>>, vector<2x32xf32>
    tpu.vector_store %arg7[%c0_5, %c0_6], %6 {strides = array<i32>} : memref<2x32xf32, #tpu.memory_space<vmem>>, vector<2x32xf32>,
    %c0_i32_7 = arith.constant 0 : i32
    %8 = arith.cmpi eq, %arg1, %c0_i32_7 : i32
    %9 = arith.extui %8 : i1 to i32
    %c0_i32_8 = arith.constant 0 : i32
    %10 = arith.cmpi ne, %9, %c0_i32_8 : i32
    scf.if %10 {
      %c0_9 = arith.constant 0 : index
      %c0_10 = arith.constant 0 : index
      %11 = vector.load %arg7[%c0_9, %c0_10] : memref<2x32xf32, #tpu.memory_space<vmem>>, vector<2x32xf32>
      %cst_11 = arith.constant 6.250000e-02 : f32
      %12 = vector.broadcast %cst_11 : f32 to vector<2x32xf32>
      %13 = arith.mulf %11, %12 : vector<2x32xf32>
      %c0_12 = arith.constant 0 : index
      %c0_13 = arith.constant 0 : index
      %14 = vector.load %arg3[%c0_12, %c0_13] : memref<32x32xf32, #tpu.memory_space<vmem>>, vector<32x32xf32>
      %cst_14 = arith.constant dense<0.000000e+00> : vector<2x32xf32>
      %15 = tpu.matmul %13, %14, %cst_14 {dimension_numbers = #tpu.dot_dimension_numbers<[1], [0], [0], [1], [0, 0, 1, 1], [], []>} : vector<2x32xf32>, vector<32x32xf32>, vector<2x32xf32> -> vector<2x32xf32>
      %c0_15 = arith.constant 0 : index
      %c0_16 = arith.constant 0 : index
      %16 = vector.load %arg4[%c0_15, %c0_16] : memref<1x32xf32, #tpu.memory_space<vmem>>, vector<1x32xf32>
      %17 = vector.broadcast %16 : vector<1x32xf32> to vector<2x32xf32>
      %18 = arith.addf %15, %17 : vector<2x32xf32>
      %19 = arith.negf %18 : vector<2x32xf32>
      %20 = math.exp %19 : vector<2x32xf32>
      %cst_17 = arith.constant 1.000000e+00 : f32
      %21 = vector.broadcast %cst_17 : f32 to vector<2x32xf32>
      %22 = arith.addf %21, %20 : vector<2x32xf32>
      %23 = arith.divf %21, %22 : vector<2x32xf32>
      %c0_18 = arith.constant 0 : index
      %c0_19 = arith.constant 0 : index
      %24 = vector.load %arg5[%c0_18, %c0_19] : memref<2x1xf32, #tpu.memory_space<vmem>>, vector<2x1xf32>
      %25 = vector.broadcast %24 : vector<2x1xf32> to vector<2x32xf32>
      %26 = arith.mulf %23, %25 : vector<2x32xf32>
      %cst_20 = arith.constant 1.000000e+00 : f32
      %27 = vector.broadcast %cst_20 : f32 to vector<2x32xf32>
      %28 = arith.addf %27, %26 : vector<2x32xf32>
      %c0_21 = arith.constant 0 : index
      %c0_22 = arith.constant 0 : index
      %29 = vector.load %arg6[%c0_21, %c0_22] : memref<2x32xf32, #tpu.memory_space<vmem>>, vector<2x32xf32>
      tpu.vector_store %arg6[%c0_21, %c0_22], %28 {strides = array<i32>} : memref<2x32xf32, #tpu.memory_space<vmem>>, vector<2x32xf32>,
    } else {
    }
    return
  }
  func.func @transform_0(%arg0: i32, %arg1: i32) -> (i32, i32, i32) {
    %c0_i32 = arith.constant 0 : i32
    %c0_i32_0 = arith.constant 0 : i32
    return %arg0, %arg1, %c0_i32 : i32, i32, i32
  }
  func.func @transform_1(%arg0: i32, %arg1: i32) -> (i32, i32) {
    %c0_i32 = arith.constant 0 : i32
    %c0_i32_0 = arith.constant 0 : i32
    %c0_i32_1 = arith.constant 0 : i32
    return %c0_i32, %c0_i32_0 : i32, i32
  }
  func.func @transform_2(%arg0: i32, %arg1: i32) -> (i32, i32) {
    %c0_i32 = arith.constant 0 : i32
    %c0_i32_0 = arith.constant 0 : i32
    %c0_i32_1 = arith.constant 0 : i32
    return %c0_i32, %c0_i32_0 : i32, i32
  }
  func.func @transform_3(%arg0: i32, %arg1: i32) -> (i32, i32) {
    %c0_i32 = arith.constant 0 : i32
    %c0_i32_0 = arith.constant 0 : i32
    return %arg0, %c0_i32 : i32, i32
  }
  func.func @transform_4(%arg0: i32, %arg1: i32) -> (i32, i32) {
    %c0_i32 = arith.constant 0 : i32
    %c0_i32_0 = arith.constant 0 : i32
    return %arg0, %c0_i32 : i32, i32
  }
}

module attributes {stable_mosaic.version = 11 : i64} {
  func.func @_scale_kernel(%arg0: i32, %arg1: i32, %arg2: memref<2x1x512xf32, #tpu.memory_space<vmem>>, %arg3: memref<2x512xf32, #tpu.memory_space<vmem>>, %arg4: memref<2x1x512xf32, #tpu.memory_space<vmem>>) attributes {dimension_semantics = [#tpu.dimension_semantics<parallel>, #tpu.dimension_semantics<parallel>], iteration_bounds = array<i64: 1, 1>, scalar_prefetch = 0 : i64, scratch_operands = 0 : i64, tpu.core_type = #tpu.core_type<tc>, window_params = [{transform_indices = @transform_0, window_bounds = array<i64: 2, 1, 512>}, {transform_indices = @transform_1, window_bounds = array<i64: 2, 512>}, {transform_indices = @transform_2, window_bounds = array<i64: 2, 1, 512>}]} {
    %c0 = arith.constant 0 : index
    %c0_0 = arith.constant 0 : index
    %0 = vector.load %arg3[%c0, %c0_0] : memref<2x512xf32, #tpu.memory_space<vmem>>, vector<2x512xf32>
    %c0_1 = arith.constant 0 : index
    %c0_2 = arith.constant 0 : index
    %c0_3 = arith.constant 0 : index
    %1 = vector.load %arg2[%c0_1, %c0_2, %c0_3] : memref<2x1x512xf32, #tpu.memory_space<vmem>>, vector<2x1x512xf32>
    %2 = vector.shape_cast %0 : vector<2x512xf32> to vector<2x1x512xf32>
    %3 = arith.mulf %1, %2 : vector<2x1x512xf32>
    %c0_4 = arith.constant 0 : index
    %c0_5 = arith.constant 0 : index
    %c0_6 = arith.constant 0 : index
    %4 = vector.load %arg4[%c0_4, %c0_5, %c0_6] : memref<2x1x512xf32, #tpu.memory_space<vmem>>, vector<2x1x512xf32>
    tpu.vector_store %arg4[%c0_4, %c0_5, %c0_6], %3 {strides = array<i32>} : memref<2x1x512xf32, #tpu.memory_space<vmem>>, vector<2x1x512xf32>,
    return
  }
  func.func @transform_0(%arg0: i32, %arg1: i32) -> (i32, i32, i32) {
    %c0_i32 = arith.constant 0 : i32
    %c0_i32_0 = arith.constant 0 : i32
    return %arg0, %arg1, %c0_i32 : i32, i32, i32
  }
  func.func @transform_1(%arg0: i32, %arg1: i32) -> (i32, i32) {
    %c0_i32 = arith.constant 0 : i32
    %c0_i32_0 = arith.constant 0 : i32
    return %arg0, %c0_i32 : i32, i32
  }
  func.func @transform_2(%arg0: i32, %arg1: i32) -> (i32, i32, i32) {
    %c0_i32 = arith.constant 0 : i32
    %c0_i32_0 = arith.constant 0 : i32
    return %arg0, %arg1, %c0_i32 : i32, i32, i32
  }
}

</mosaic_0001>

<llo_original>
// kernel: tile.9
$region0: #{tile.9}
  %s0 = inlined_call_operand.vmem [shape: f32[2,16,32], index: 0, kind: input, shape index: {}]
  %s1 = inlined_call_operand.hbm [shape: f32[2,512], index: 1, kind: output, shape index: {}]
  $region1: #{tile.9} parent=0
    #allocation0 [shape = 'u8[4096]{0}', space=vmem, size = 0x1000, scoped, tag = 'operand span for operand 1']
    #allocation1 [shape = 's32[1]{0}', space=sflag, size = 0x4, scoped, tag = 'scoped memory for tile.9']
    #allocation2 [shape = 'u8[16384]{0}', space=vmem, size = 0x4000, scoped, tag = 'scoped mem for output reshape']
    %2 = vsyncpa [#allocation1], 0
    %v3 = vld [vmem:[%s0] ss:$4 sm:$0xff]
    %vm4 = vcmask 261120
    %5 = vst.msk [vmem:[#allocation2] ss:$8 sm:$0xf] %vm4, %v3
    %s6 = scalar_lea.vmem [#allocation2], 4294967265
    %7 = vst.msk [vmem:[%s6] ss:$8 sm:$0xf0] %vm4, %v3
    %s8 = scalar_lea.vmem %s0, 3
    %s9 = smov 3
    %v10 = vld [vmem:[%s8] ss:$16 sm:%s9]
    %s11 = scalar_lea.vmem %s0, 4294967271
    %s12 = smov 12
    %v13 = vld [vmem:[%s11] ss:$16 sm:%s12]
    %vm14 = vcmask 1043458
    %v15 = vsel %vm14, %v13, %v10
    %s16 = scalar_lea.vmem %s0, 4294967243
    %s17 = smov 48
    %v18 = vld [vmem:[%s16] ss:$16 sm:%s17]
    %vm19 = vcmask 1045508
    %v20 = vsel %vm19, %v18, %v15
    %s21 = scalar_lea.vmem %s0, 4294967215
    %s22 = smov 192
    %v23 = vld [vmem:[%s21] ss:$16 sm:%s22]
    %vm24 = vcmask 1047558
    %v25 = vsel %vm24, %v23, %v20
    %26 = vrot.lane.b32.xlu0 %v25, 96
    %v27 = vpop.permute.xlu0 %26
    %vm28 = vcmask 1048320
    %29 = vst.msk [vmem:[#allocation2] sm:$0x3] %vm28, %v27
    %s30 = scalar_lea.vmem [#allocation2], 6
    %31 = vst.msk [vmem:[%s30] sm:$0xc] %vm28, %v27
    %s32 = scalar_lea.vmem [#allocation2], 12
    %33 = vst.msk [vmem:[%s32] sm:$0x30] %vm28, %v27
    %s34 = scalar_lea.vmem [#allocation2], 18
    %35 = vst.msk [vmem:[%s34] sm:$0xc0] %vm28, %v27
    %s36 = scalar_lea.vmem %s0, 2
    %s37 = smov 3
    %v38 = vld [vmem:[%s36] ss:$16 sm:%s37]
    %s39 = scalar_lea.vmem %s0, 4294967270
    %s40 = smov 12
    %v41 = vld [vmem:[%s39] ss:$16 sm:%s40]
    %vm42 = vcmask 1043458
    %v43 = vsel %vm42, %v41, %v38
    %s44 = scalar_lea.vmem %s0, 4294967242
    %s45 = smov 48
    %v46 = vld [vmem:[%s44] ss:$16 sm:%s45]
    %vm47 = vcmask 1045508
    %v48 = vsel %vm47, %v46, %v43
    %s49 = scalar_lea.vmem %s0, 4294967214
    %s50 = smov 192
    %v51 = vld [vmem:[%s49] ss:$16 sm:%s50]
    %vm52 = vcmask 1047558
    %v53 = vsel %vm52, %v51, %v48
    %54 = vrot.lane.b32.xlu0 %v53, 64
    %v55 = vpop.permute.xlu0 %54
    %vm56 = vcmask 785920
    %57 = vst.msk [vmem:[#allocation2] sm:$0x3] %vm56, %v55
    %s58 = scalar_lea.vmem [#allocation2], 6
    %59 = vst.msk [vmem:[%s58] sm:$0xc] %vm56, %v55
    %s60 = scalar_lea.vmem [#allocation2], 12
    %61 = vst.msk [vmem:[%s60] sm:$0x30] %vm56, %v55
    %s62 = scalar_lea.vmem [#allocation2], 18
    %63 = vst.msk [vmem:[%s62] sm:$0xc0] %vm56, %v55
    %s64 = scalar_lea.vmem %s0, 1
    %s65 = smov 3
    %v66 = vld [vmem:[%s64] ss:$16 sm:%s65]
    %s67 = scalar_lea.vmem %s0, 4294967269
    %s68 = smov 12
    %v69 = vld [vmem:[%s67] ss:$16 sm:%s68]
    %vm70 = vcmask 1043458
    %v71 = vsel %vm70, %v69, %v66
    %s72 = scalar_lea.vmem %s0, 4294967241
    %s73 = smov 48
    %v74 = vld [vmem:[%s72] ss:$16 sm:%s73]
    %vm75 = vcmask 1045508
    %v76 = vsel %vm75, %v74, %v71
    %s77 = scalar_lea.vmem %s0, 4294967213
    %s78 = smov 192
    %v79 = vld [vmem:[%s77] ss:$16 sm:%s78]
    %vm80 = vcmask 1047558
    %v81 = vsel %vm80, %v79, %v76
    %82 = vrot.lane.b32.xlu0 %v81, 32
    %v83 = vpop.permute.xlu0 %82
    %vm84 = vcmask 523520
    %85 = vst.msk [vmem:[#allocation2] sm:$0x3] %vm84, %v83
    %s86 = scalar_lea.vmem [#allocation2], 6
    %87 = vst.msk [vmem:[%s86] sm:$0xc] %vm84, %v83
    %s88 = scalar_lea.vmem [#allocation2], 12
    %89 = vst.msk [vmem:[%s88] sm:$0x30] %vm84, %v83
    %s90 = scalar_lea.vmem [#allocation2], 18
    %91 = vst.msk [vmem:[%s90] sm:$0xc0] %vm84, %v83
    %s93 = sshllo.u32 0, 2
    %v95 = vld [vmem:[#allocation2] sm:%s93]
    %s96 = sshllo.u32 0, 2
    %97 = vst [vmem:[#allocation0] sm:%s96] %v95
    %s98 = scalar_lea.vmem [#allocation2], 8
    %v99 = vld [vmem:[%s98] sm:%s93]
    %s100 = sshllo.u32 0, 2
    %s101 = scalar_lea.vmem [#allocation0], 2
    %102 = vst [vmem:[%s101] sm:%s100] %v99
    %s103 = scalar_lea.vmem [#allocation2], 16
    %v104 = vld [vmem:[%s103] sm:%s93]
    %s105 = sshllo.u32 0, 2
    %s106 = smul.addr 2, 2
    %s107 = scalar_lea.vmem [#allocation0], %s106
    %108 = vst [vmem:[%s107] sm:%s105] %v104
    %s109 = scalar_lea.vmem [#allocation2], 24
    %v110 = vld [vmem:[%s109] sm:%s93]
    %s111 = sshllo.u32 0, 2
    %s112 = smul.addr 2, 3
    %s113 = scalar_lea.vmem [#allocation0], %s112
    %114 = vst [vmem:[%s113] sm:%s111] %v110
    %s116 = ssub.s32 128, 128
    %117 = vsyncadd [#allocation1], %s116
    %s119 = sshll.u32 [#allocation0], 4
    %s120 = int_to_ptr.vmem [resolvable:$true] %s119
    %122 = dma.vmem_to_hbm [thread:$0]  %s120, 128, %s1, [#allocation1]
    %123 = dma.done [#allocation1], 128
    %124 = vsyncpa [#allocation1], 1

// kernel: channel_via_residual.3
$region0: #{channel_via_residual.3}
  #allocation0 [shape = 'u32[]', space=smem, size = 0x4, offset = 0x4, fixed_abs, tag = 'smem constant byte address 0x4 - core index']
  #allocation1 [shape = 'u32[144,128]{1,0:T(1,128)}', space=vmem, size = 0x12000, scoped, tag = 'internal scratch']
  %s0 = inlined_call_operand.hbm [shape: f32[2,1,512], index: 0, kind: input, shape index: {}]
  %s1 = inlined_call_operand.hbm [shape: f32[2,512], index: 1, kind: input, shape index: {}]
  %s2 = inlined_call_operand.hbm [shape: f32[2,1,512], index: 2, kind: output, shape index: {}]
  %s3 = sld [smem:[#allocation0]]
  $region26: #{channel_via_residual.3} parent=0
    _
  %s5 = ssub.s32 1, %s3
  %s6 = scalar_select 0, %s5, %s3
  $region1: #{channel_via_residual.3} parent=0
    #allocation2 [shape = 'u8[4096]{0}', space=vmem, size = 0x1000, scoped, tag = 'input window, operand 0, single buffered']
    #allocation3 [shape = 's32[1]{0}', space=sflag, size = 0x4, scoped, tag = 'scoped memory for channel_via_residual.3']
    #allocation4 [shape = 's32[1]{0}', space=sflag, size = 0x4, scoped, tag = 'scoped memory for channel_via_residual.3']
    #allocation5 [shape = 'u8[4096]{0}', space=vmem, size = 0x1000, scoped, tag = 'input window, operand 1, single buffered']
    #allocation6 [shape = 's32[1]{0}', space=sflag, size = 0x4, scoped, tag = 'scoped memory for channel_via_residual.3']
    #allocation7 [shape = 'u8[4096]{0}', space=vmem, size = 0x1000, scoped, tag = 'output window, operand 0, single buffered']
    %7 = vsyncpa [#allocation3], 0
    %8 = vsyncpa [#allocation6], 0
    %9 = vsyncpa [#allocation4], 0
    // Predicated region
    $region2: #{channel_via_residual.3} parent=1 // pred_check
      _
    $region3: #{channel_via_residual.3} parent=1 // pred_check_branch
      %11 = sbr.rel (0) target = $region5
    $region4: #{channel_via_residual.3} parent=1 // pred_region
      %s13 = ssub.s32 128, 128
      %14 = vsyncadd [#allocation3], %s13
      %s15 = sshll.u32 [#allocation2], 4
      %s16 = int_to_ptr.vmem [resolvable:$true] %s15
      %21 = dma.hbm_to_vmem [thread:$0]  %s0, 128, %s16, [#allocation3], 64, 64, 4
    $region5: #{channel_via_residual.3} parent=1 // pred_fallthru
      _
    // Predicated region
    $region6: #{channel_via_residual.3} parent=1 // pred_check
      _
    $region7: #{channel_via_residual.3} parent=1 // pred_check_branch
      %23 = sbr.rel (0) target = $region9
    $region8: #{channel_via_residual.3} parent=1 // pred_region
      %s25 = ssub.s32 128, 128
      %26 = vsyncadd [#allocation6], %s25
      %s28 = sshll.u32 [#allocation5], 4
      %s29 = int_to_ptr.vmem [resolvable:$true] %s28
      %31 = dma.hbm_to_vmem [thread:$0]  %s1, 128, %s29, [#allocation6]
    $region9: #{channel_via_residual.3} parent=1 // pred_fallthru
      _
    // Predicated region
    $region10: #{channel_via_residual.3} parent=1 // pred_check
      _
    $region11: #{channel_via_residual.3} parent=1 // pred_check_branch
      %33 = sbr.rel (0) target = $region13
    $region12: #{channel_via_residual.3} parent=1 // pred_region
      %34 = dma.done [#allocation3], 128
    $region13: #{channel_via_residual.3} parent=1 // pred_fallthru
      _
    // Predicated region
    $region14: #{channel_via_residual.3} parent=1 // pred_check
      _
    $region15: #{channel_via_residual.3} parent=1 // pred_check_branch
      %36 = sbr.rel (0) target = $region17
    $region16: #{channel_via_residual.3} parent=1 // pred_region
      %37 = dma.done [#allocation6], 128
    $region17: #{channel_via_residual.3} parent=1 // pred_fallthru
      _
    %v38 = vld [vmem:[#allocation5] sm:$0xff]
    %v39 = vld [vmem:[#allocation2] sm:$0xf]
    %v40 = vld [vmem:[#allocation2 + $0x4] sm:$0xf]
    %v43 = vunpack.c.l.s4 1966171168
    %v44 = vunpack.c.0.s8 %v43
    %v45 = vlaneseq
    %v46 = vshrl.u32 %v45, 7
    %v47 = vsub.s32 %v44, %v46
    %v48 = vrot.slane %v38, %v47
    %v49 = vcombine.high %v48, %v48
    %v52 = vmul.f32 %v39, %v48
    %v53 = vmul.f32 %v40, %v49
    %v54 = vlaneseq
    %vm55 = vcmp.ge.s32.totalorder %v54, 0
    %vm56 = vcmp.lt.s32.totalorder %v54, 512
    %vm57 = vmand %vm55, %vm56
    %58 = vst.msk [vmem:[#allocation7] sm:$0xf] %vm57, %v52
    %59 = vst.msk [vmem:[#allocation7 + $0x4] sm:$0xf] %vm57, %v53
    // Predicated region
    $region18: #{channel_via_residual.3} parent=1 // pred_check
      _
    $region19: #{channel_via_residual.3} parent=1 // pred_check_branch
      %61 = sbr.rel (0) target = $region21
    $region20: #{channel_via_residual.3} parent=1 // pred_region
      %s63 = ssub.s32 128, 128
      %64 = vsyncadd [#allocation4], %s63
      %s65 = sshll.u32 [#allocation7], 4
      %s66 = int_to_ptr.vmem [resolvable:$true] %s65
      %71 = dma.vmem_to_hbm [thread:$0]  %s66, 128, %s2, [#allocation4], 64, 64, 4
    $region21: #{channel_via_residual.3} parent=1 // pred_fallthru
      _
    // Predicated region
    $region22: #{channel_via_residual.3} parent=1 // pred_check
      _
    $region23: #{channel_via_residual.3} parent=1 // pred_check_branch
      %73 = sbr.rel (0) target = $region25
    $region24: #{channel_via_residual.3} parent=1 // pred_region
      %74 = dma.done [#allocation4], 128
    $region25: #{channel_via_residual.3} parent=1 // pred_fallthru
      _
    %75 = vsyncpa [#allocation3], 1
    %76 = vsyncpa [#allocation6], 1
    %77 = vsyncpa [#allocation4], 1

// kernel: channel_via_residual.2
$region0: #{channel_via_residual.2}
  #allocation0 [shape = 'u32[]', space=smem, size = 0x4, offset = 0x4, fixed_abs, tag = 'smem constant byte address 0x4 - core index']
  #allocation1 [shape = 'u32[144,128]{1,0:T(1,128)}', space=vmem, size = 0x12000, scoped, tag = 'internal scratch']
  #allocation2 [shape = 'f32[2,32]{1,0:T(2,128)}', space=vmem, size = 0x400, scoped, tag = 'scratch operand']
  %s0 = inlined_call_operand.hbm [shape: f32[2,16,32], index: 0, kind: input, shape index: {}]
  %s1 = inlined_call_operand.hbm [shape: f32[32,32], index: 1, kind: input, shape index: {}]
  %s2 = inlined_call_operand.hbm [shape: f32[1,32], index: 2, kind: input, shape index: {}]
  %s3 = inlined_call_operand.hbm [shape: f32[2,1], index: 3, kind: input, shape index: {}]
  %s4 = inlined_call_operand.hbm [shape: f32[2,32], index: 4, kind: output, shape index: {}]
  %s5 = sld [smem:[#allocation0]]
  $region50: #{channel_via_residual.2} parent=0
    _
  %s7 = ssub.s32 1, %s5
  %s8 = scalar_select 0, %s7, %s5
  $region1: #{channel_via_residual.2} parent=0
    #allocation3 [shape = 'u8[16384]{0}', space=vmem, size = 0x4000, scoped, tag = 'input window, operand 0, single buffered']
    #allocation4 [shape = 's32[1]{0}', space=sflag, size = 0x4, scoped, tag = 'scoped memory for channel_via_residual.2']
    #allocation5 [shape = 's32[1]{0}', space=sflag, size = 0x4, scoped, tag = 'scoped memory for channel_via_residual.2']
    #allocation6 [shape = 'u8[16384]{0}', space=vmem, size = 0x4000, scoped, tag = 'input window, operand 1, single buffered']
    #allocation7 [shape = 's32[1]{0}', space=sflag, size = 0x4, scoped, tag = 'scoped memory for channel_via_residual.2']
    #allocation8 [shape = 'u8[512]{0}', space=vmem, size = 0x400, scoped, tag = 'input window, operand 2, single buffered']
    #allocation9 [shape = 'u8[1024]{0}', space=vmem, size = 0x400, scoped, tag = 'input window, operand 3, single buffered']
    #allocation10 [shape = 's32[1]{0}', space=sflag, size = 0x4, scoped, tag = 'scoped memory for channel_via_residual.2']
    #allocation11 [shape = 'u8[1024]{0}', space=vmem, size = 0x400, scoped, tag = 'output window, operand 0, single buffered']
    %9 = vsyncpa [#allocation4], 0
    %10 = vsyncpa [#allocation7], 0
    %11 = vsyncpa [#allocation10], 0
    %12 = vsyncpa [#allocation5], 0
    // Predicated region
    $region2: #{channel_via_residual.2} parent=1 // pred_check
      _
    $region3: #{channel_via_residual.2} parent=1 // pred_check_branch
      %14 = sbr.rel (0) target = $region5
    $region4: #{channel_via_residual.2} parent=1 // pred_region
      %s16 = ssub.s32 512, 512
      %17 = vsyncadd [#allocation4], %s16
      %s18 = sshll.u32 [#allocation3], 4
      %s19 = int_to_ptr.vmem [resolvable:$true] %s18
      %24 = dma.hbm_to_vmem [thread:$0]  %s0, 512, %s19, [#allocation4], 128, 128, 8
    $region5: #{channel_via_residual.2} parent=1 // pred_fallthru
      _
    // Predicated region
    $region6: #{channel_via_residual.2} parent=1 // pred_check
      _
    $region7: #{channel_via_residual.2} parent=1 // pred_check_branch
      %26 = sbr.rel (0) target = $region9
    $region8: #{channel_via_residual.2} parent=1 // pred_region
      %s28 = ssub.s32 512, 512
      %29 = vsyncadd [#allocation7], %s28
      %s30 = sshll.u32 [#allocation6], 4
      %s31 = int_to_ptr.vmem [resolvable:$true] %s30
      %36 = dma.hbm_to_vmem [thread:$0]  %s1, 512, %s31, [#allocation7], 128, 128, 8
    $region9: #{channel_via_residual.2} parent=1 // pred_fallthru
      _
    // Predicated region
    $region10: #{channel_via_residual.2} parent=1 // pred_check
      _
    $region11: #{channel_via_residual.2} parent=1 // pred_check_branch
      %38 = sbr.rel (0) target = $region13
    $region12: #{channel_via_residual.2} parent=1 // pred_region
      %s40 = ssub.s32 16, 16
      %41 = vsyncadd [#allocation7], %s40
      %s43 = sshll.u32 [#allocation8], 4
      %s44 = int_to_ptr.vmem [resolvable:$true] %s43
      %46 = dma.hbm_to_vmem [thread:$0]  %s2, 16, %s44, [#allocation7]
    $region13: #{channel_via_residual.2} parent=1 // pred_fallthru
      _
    // Predicated region
    $region14: #{channel_via_residual.2} parent=1 // pred_check
      _
    $region15: #{channel_via_residual.2} parent=1 // pred_check_branch
      %48 = sbr.rel (0) target = $region17
    $region16: #{channel_via_residual.2} parent=1 // pred_region
      %s50 = ssub.s32 32, 32
      %51 = vsyncadd [#allocation10], %s50
      %s53 = sshll.u32 [#allocation9], 4
      %s54 = int_to_ptr.vmem [resolvable:$true] %s53
      %56 = dma.hbm_to_vmem [thread:$0]  %s3, 32, %s54, [#allocation10]
    $region17: #{channel_via_residual.2} parent=1 // pred_fallthru
      _
    // Predicated region
    $region18: #{channel_via_residual.2} parent=1 // pred_check
      _
    $region19: #{channel_via_residual.2} parent=1 // pred_check_branch
      %58 = sbr.rel (0) target = $region21
    $region20: #{channel_via_residual.2} parent=1 // pred_region
      %59 = dma.done [#allocation4], 512
    $region21: #{channel_via_residual.2} parent=1 // pred_fallthru
      _
    // Predicated region
    $region22: #{channel_via_residual.2} parent=1 // pred_check
      _
    $region23: #{channel_via_residual.2} parent=1 // pred_check_branch
      %61 = sbr.rel (0) target = $region25
    $region24: #{channel_via_residual.2} parent=1 // pred_region
      %62 = dma.done [#allocation7], 512
    $region25: #{channel_via_residual.2} parent=1 // pred_fallthru
      _
    // Predicated region
    $region26: #{channel_via_residual.2} parent=1 // pred_check
      _
    $region27: #{channel_via_residual.2} parent=1 // pred_check_branch
      %64 = sbr.rel (0) target = $region29
    $region28: #{channel_via_residual.2} parent=1 // pred_region
      %65 = dma.done [#allocation7], 16
    $region29: #{channel_via_residual.2} parent=1 // pred_fallthru
      _
    // Predicated region
    $region30: #{channel_via_residual.2} parent=1 // pred_check
      _
    $region31: #{channel_via_residual.2} parent=1 // pred_check_branch
      %67 = sbr.rel (0) target = $region33
    $region32: #{channel_via_residual.2} parent=1 // pred_region
      %68 = dma.done [#allocation10], 32
    $region33: #{channel_via_residual.2} parent=1 // pred_fallthru
      _
    %p69 = scmp.eq.s32.totalorder 0, 0
    // Predicated region
    $region34: #{channel_via_residual.2} parent=1 // pred_check
      %p70 = pneg %p69
    $region35: #{channel_via_residual.2} parent=1 // pred_check_branch
      %72 = sbr.rel (%p70) target = $region37
    $region36: #{channel_via_residual.2} parent=1 // pred_region
      %vm73 = vcmask 254976
      %74 = vst.msk [vmem:[#allocation2] sm:$0x3] %vm73, 0.0
    $region37: #{channel_via_residual.2} parent=1 // pred_fallthru
      _
    %v75 = vld [vmem:[#allocation2] sm:$0x3]
    %v76 = vld [vmem:[#allocation3] sm:$0xff]
    %v77 = vld [vmem:[#allocation3 + $0x8] sm:$0xff]
    %v78 = vld [vmem:[#allocation3 + $0x10] sm:$0xff]
    %v79 = vld [vmem:[#allocation3 + $0x18] sm:$0xff]
    %vm80 = vcmask 261120
    %v81 = vsel %vm80, %v76, 0.0
    %v82 = vsel %vm80, %v77, 0.0
    %v83 = vadd.f32 %v81, %v82
    %v84 = vrot.slane %v83, 4
    %v85 = vadd.f32 %v83, %v84
    %v86 = vrot.slane %v85, 2
    %v87 = vadd.f32 %v85, %v86
    %v88 = vrot.slane %v87, 1
    %v89 = vadd.f32 %v87, %v88
    %v90 = vsel %vm80, %v78, 0.0
    %v91 = vsel %vm80, %v79, 0.0
    %v92 = vadd.f32 %v90, %v91
    %v93 = vrot.slane %v92, 4
    %v94 = vadd.f32 %v92, %v93
    %v95 = vrot.slane %v94, 2
    %v96 = vadd.f32 %v94, %v95
    %v97 = vrot.slane %v96, 1
    %v98 = vadd.f32 %v96, %v97
    %vm101 = vcmask 1041409
    %v102 = vsel %vm101, %v98, %v89
    %v104 = vadd.f32 %v75, %v102
    %vm105 = vcmask 254976
    %106 = vst.msk [vmem:[#allocation2] sm:$0x3] %vm105, %v104
    // Predicated region
    $region38: #{channel_via_residual.2} parent=1 // pred_check
      %p107 = pneg %p69
    $region39: #{channel_via_residual.2} parent=1 // pred_check_branch
      %109 = sbr.rel (%p107) target = $region41
    $region40: #{channel_via_residual.2} parent=1 // pred_region
      %v110 = vld [vmem:[#allocation2] sm:$0x3]
      %v111 = vmul.f32 %v110, 0.0625
      %v112 = vld [vmem:[#allocation6] sm:$0xff]
      %v113 = vld [vmem:[#allocation6 + $0x8] sm:$0xff]
      %v114 = vld [vmem:[#allocation6 + $0x10] sm:$0xff]
      %v115 = vld [vmem:[#allocation6 + $0x18] sm:$0xff]
      %v116 = vld [vmem:[#allocation8] sm:$0x1]
      %v118 = vlaneseq
      %v119 = vshrl.u32 %v118, 7
      %v120 = vsub.s32 0, %v119
      %v121 = vrot.slane %v116, %v120
      %v124 = vsel %vm80, %v111, 0
      %126 = vmatprep.subr.mxu0 0.0
      %127 = vmatpush1.msra.mxu0 %v112
      %128 = vmatprep.subr.mxu0 0.0
      %129 = vmatpush1.msra.mxu0 %v113
      %130 = vmatprep.subr.mxu0 0.0
      %131 = vmatpush1.msra.mxu0 %v114
      %132 = vmatprep.subr.mxu0 0.0
      %133 = vmatpush1.msra.mxu0 %v115
      %134 = vmatprep.subr.mxu0 0.0
      %135 = vmatpush1.msra.mxu0 0.0
      %136 = vmatprep.subr.mxu0 0.0
      %137 = vmatpush1.msra.mxu0 0.0
      %138 = vmatprep.subr.mxu0 0.0
      %139 = vmatpush1.msra.mxu0 0.0
      %140 = vmatprep.subr.mxu0 0.0
      %141 = vmatpush1.msra.mxu0 0.0
      %142 = vmatprep.subr.mxu0 0.0
      %143 = vmatpush1.msra.mxu0 0.0
      %144 = vmatprep.subr.mxu0 0.0
      %145 = vmatpush1.msra.mxu0 0.0
      %146 = vmatprep.subr.mxu0 0.0
      %147 = vmatpush1.msra.mxu0 0.0
      %148 = vmatprep.subr.mxu0 0.0
      %149 = vmatpush1.msra.mxu0 0.0
      %150 = vmatprep.subr.mxu0 0.0
      %151 = vmatpush1.msra.mxu0 0.0
      %152 = vmatprep.subr.mxu0 0.0
      %153 = vmatpush1.msra.mxu0 0.0
      %154 = vmatprep.subr.mxu0 0.0
      %155 = vmatpush1.msra.mxu0 0.0
      %156 = vmatprep.subr.mxu0 0.0
      %157 = vmatpush1.msra.mxu0 0.0
      %158 = vmatprep.subr.mxu0 0.0
      %159 = vmatpush1.msra.mxu0 0.0
      %160 = vmatprep.subr.mxu0 0.0
      %161 = vmatpush1.msra.mxu0 0.0
      %162 = vmatprep.subr.mxu0 0.0
      %163 = vmatpush1.msra.mxu0 0.0
      %164 = vmatprep.subr.mxu0 0.0
      %165 = vmatpush1.msra.mxu0 0.0
      %166 = vmatprep.subr.mxu0 0.0
      %167 = vmatpush1.msra.mxu0 0.0
      %168 = vmatprep.subr.mxu0 0.0
      %169 = vmatpush1.msra.mxu0 0.0
      %170 = vmatprep.subr.mxu0 0.0
      %171 = vmatpush1.msra.mxu0 0.0
      %172 = vmatprep.subr.mxu0 0.0
      %173 = vmatpush1.msra.mxu0 0.0
      %174 = vmatprep.subr.mxu0 0.0
      %175 = vmatpush1.msra.mxu0 0.0
      %176 = vmatprep.subr.mxu0 0.0
      %177 = vmatpush1.msra.mxu0 0.0
      %178 = vmatprep.subr.mxu0 0.0
      %179 = vmatpush1.msra.mxu0 0.0
      %180 = vmatprep.subr.mxu0 0.0
      %181 = vmatpush1.msra.mxu0 0.0
      %182 = vmatprep.subr.mxu0 0.0
      %183 = vmatpush1.msra.mxu0 0.0
      %184 = vmatprep.subr.mxu0 0.0
      %185 = vmatpush1.msra.mxu0 0.0
      %186 = vmatprep.subr.mxu0 0.0
      %187 = vmatpush1.msra.mxu0 0.0
      %188 = vmatprep.subr.mxu0 0.0
      %189 = vmatpush1.msra.mxu0 0.0
      %190 = vmatprep.mubr.f32.mxu0 0.0
      %191 = vmatmul.mubr.f32.gmra.mrb[0].mxu0 %v124
      %v192 = vpop.f32.mrb[0].mxu0
      %v193 = vadd.f32 %v121, %v192
      %v194 = vpop.f32.mrb[0].mxu0
      %195 = vdwg.mxu0
      %v196 = vxor.u32 %v193, 2147483648
      %v197 = vmul.f32 %v196, 1.442695
      %v198 = vpow.pop %v197
      %v199 = vadd.f32 %v198, 1.0
      %v200 = vrcp.pop %v199
      %v201 = vmul.f32 1.0, %v200
      %v202 = vld [vmem:[#allocation9] sm:$0x3]
      %204 = vset.pattern.permute.xlu0 0
      %205 = vperm.xlu0 %204, %v202
      %v206 = vpop.permute.xlu0 %205
      %v208 = vmul.f32 %v201, %v206
      %v209 = vadd.f32 %v208, 1.0
      %210 = vst.msk [vmem:[#allocation11] sm:$0x3] %vm105, %v209
    $region41: #{channel_via_residual.2} parent=1 // pred_fallthru
      _
    // Predicated region
    $region42: #{channel_via_residual.2} parent=1 // pred_check
      _
    $region43: #{channel_via_residual.2} parent=1 // pred_check_branch
      %212 = sbr.rel (0) target = $region45
    $region44: #{channel_via_residual.2} parent=1 // pred_region
      %s214 = ssub.s32 32, 32
      %215 = vsyncadd [#allocation5], %s214
      %s217 = sshll.u32 [#allocation11], 4
      %s218 = int_to_ptr.vmem [resolvable:$true] %s217
      %220 = dma.vmem_to_hbm [thread:$0]  %s218, 32, %s4, [#allocation5]
    $region45: #{channel_via_residual.2} parent=1 // pred_fallthru
      _
    // Predicated region
    $region46: #{channel_via_residual.2} parent=1 // pred_check
      _
    $region47: #{channel_via_residual.2} parent=1 // pred_check_branch
      %222 = sbr.rel (0) target = $region49
    $region48: #{channel_via_residual.2} parent=1 // pred_region
      %223 = dma.done [#allocation5], 32
    $region49: #{channel_via_residual.2} parent=1 // pred_fallthru
      _
    %224 = vsyncpa [#allocation4], 1
    %225 = vsyncpa [#allocation7], 1
    %226 = vsyncpa [#allocation10], 1
    %227 = vsyncpa [#allocation5], 1

</llo_original>
